<compile_context>
chip_gen: v5e
topology: v5e:2x2
jax: 0.10.0
libtpu: 0.0.40
codegen_flags: <defaults>
</compile_context>

<pallas_src>
import jax
import jax.numpy as jnp
from jax.experimental import pallas as pl
from jax.experimental.pallas import tpu as pltpu


# ---------------------------------------------------------------------------
# Pallas kernels
# ---------------------------------------------------------------------------
def _conv_stats_kernel(a_ref, w_ref, y_ref, sum_ref, ssq_ref):
    # a: (tm, K) bf16, w: (K, tn) bf16 -> y: (tm, tn) f32 on the MXU.
    y = jnp.dot(a_ref[...], w_ref[...], preferred_element_type=jnp.float32)
    y_ref[...] = y
    # Per-(M-tile, C-tile) partial statistics for the training-mode BatchNorm.
    sum_ref[...] = jnp.sum(y, axis=0, keepdims=True)[None]        # (1, 1, tn)
    ssq_ref[...] = jnp.sum(y * y, axis=0, keepdims=True)[None]    # (1, 1, tn)


def conv_matmul_stats(a, w):
    """(M, K) @ (K, Cout) on the MXU + fused per-channel sum / sum-of-squares.

    Returns (y_f32, partial_sums, partial_sumsq) where the partials have shape
    (num_m_tiles, Cout) and are reduced (trivially) by the caller.
    """
    M, K = a.shape
    Cout = w.shape[1]
    tm = M if M <= 512 else 512          # few big tiles: per-grid-step overhead bound
    assert M % tm == 0
    tn = 128 if (Cout % 128 == 0 and Cout > 128) else Cout
    num_m, num_n = M // tm, Cout // tn

    y, sums, ssqs = pl.pallas_call(
        _conv_stats_kernel,
        out_shape=(
            jax.ShapeDtypeStruct((M, Cout), jnp.float32),
            jax.ShapeDtypeStruct((num_m, 1, Cout), jnp.float32),
            jax.ShapeDtypeStruct((num_m, 1, Cout), jnp.float32),
        ),
        grid_spec=pltpu.PrefetchScalarGridSpec(
            num_scalar_prefetch=0,
            grid=(num_m, num_n),
            in_specs=[
                pl.BlockSpec((tm, K), lambda i, j: (i, 0)),
                pl.BlockSpec((K, tn), lambda i, j: (0, j)),
            ],
            out_specs=(
                pl.BlockSpec((tm, tn), lambda i, j: (i, j)),
                pl.BlockSpec((1, 1, tn), lambda i, j: (i, 0, j)),
                pl.BlockSpec((1, 1, tn), lambda i, j: (i, 0, j)),
            ),
        ),
        compiler_params=pltpu.CompilerParams(
            dimension_semantics=("parallel", "parallel"),
        ),
    )(a, w)
    return y, sums[:, 0, :], ssqs[:, 0, :]


def _bn_relu_kernel(x_ref, scale_ref, shift_ref, o_ref):
    # y = relu(x * scale + shift); scale/shift are per-channel (1, tn), f32.
    o_ref[...] = jnp.maximum(x_ref[...] * scale_ref[...] + shift_ref[...], 0.0)


def bn_relu(y, scale, shift):
    """Fused affine-BatchNorm + ReLU elementwise kernel over (M, C)."""
    M, C = y.shape
    tm = M if M <= 512 else 512
    assert M % tm == 0
    tn = 128 if (C % 128 == 0 and C > 128) else C
    return pl.pallas_call(
        _bn_relu_kernel,
        out_shape=jax.ShapeDtypeStruct((M, C), jnp.float32),
        grid_spec=pltpu.PrefetchScalarGridSpec(
            num_scalar_prefetch=0,
            grid=(M // tm, C // tn),
            in_specs=[
                pl.BlockSpec((tm, tn), lambda i, j: (i, j)),
                pl.BlockSpec((1, tn), lambda i, j: (0, j)),
                pl.BlockSpec((1, tn), lambda i, j: (0, j)),
            ],
            out_specs=pl.BlockSpec((tm, tn), lambda i, j: (i, j)),
        ),
        compiler_params=pltpu.CompilerParams(
            dimension_semantics=("parallel", "parallel"),
        ),
    )(y, scale, shift)


# ---------------------------------------------------------------------------
# JAX glue: im2col, pooling, parameter setup
# ---------------------------------------------------------------------------
def im2col_3x3x3(x):
    """x: (N, D, H, W, C) -> patches (N*D*H*W, 27*C), pad=1, stride=1."""
    N, D, H, W, C = x.shape
    xp = jnp.pad(x, ((0, 0), (1, 1), (1, 1), (1, 1), (0, 0)))
    taps = []
    for kd in range(3):
        for kh in range(3):
            for kw in range(3):
                taps.append(xp[:, kd:kd + D, kh:kh + H, kw:kw + W, :])
    patches = jnp.stack(taps, axis=4)            # (N, D, H, W, 27, C)
    return patches.reshape(N * D * H * W, 27 * C)


def conv_bn_relu_block(x, w, gamma, beta, eps=1e-5):
    """Conv3d(3x3x3, pad=1, no bias*) -> BatchNorm3d (batch stats) -> ReLU.

    *The conv bias is omitted: training-mode BatchNorm subtracts the batch
     mean per channel, so the bias cancels exactly and the output is identical.
    """
    N, D, H, W, Cin = x.shape
    Cout = w.shape[-1]
    M = N * D * H * W

    # bf16 MXU operands (f32 accumulation inside the kernel).
    a = im2col_3x3x3(x.astype(jnp.bfloat16))                 # (M, 27*Cin) bf16
    wmat = w.reshape(27 * Cin, Cout).astype(jnp.bfloat16)    # (27*Cin, Cout) bf16

    y, sums, ssqs = conv_matmul_stats(a, wmat)               # Pallas MXU + stats

    # Finalize BN statistics (tiny (num_m_tiles, Cout) partials -> (Cout,)).
    s = jnp.sum(sums, axis=0)
    ss = jnp.sum(ssqs, axis=0)
    mean = s / M
    var = jnp.maximum(ss / M - mean * mean, 0.0)             # biased (training) var
    inv_std = jax.lax.rsqrt(var + eps)
    scale = (gamma * inv_std).reshape(1, Cout)
    shift = (beta - mean * gamma * inv_std).reshape(1, Cout)

    y = bn_relu(y, scale, shift)                             # Pallas elementwise
    return y.reshape(N, D, H, W, Cout)


def max_pool3d_2(x):
    # F.max_pool3d(t, 2): window 2, stride 2, no padding (reshape+max glue).
    N, D, H, W, C = x.shape
    x = x.reshape(N, D // 2, 2, H // 2, 2, W // 2, 2, C)
    return x.max(axis=(2, 4, 6))


def init_params(key):
    def conv_block_params(k, cin, cout):
        fan_in = 27 * cin
        w = jax.random.normal(k, (3, 3, 3, cin, cout), jnp.float32) * (
            1.0 / jnp.sqrt(fan_in)
        )
        # Conv bias omitted (exactly cancelled by the training-mode BN below).
        gamma = jnp.ones((cout,), jnp.float32)   # BatchNorm3d default init
        beta = jnp.zeros((cout,), jnp.float32)
        return (w, gamma, beta)

    keys = jax.random.split(key, 4)
    chans = [(2, 64), (64, 128), (128, 256), (256, 256)]
    return {
        f"block{i + 1}": conv_block_params(keys[i], ci, co)
        for i, (ci, co) in enumerate(chans)
    }


def temporal_cnn_forward(x_ncdhw, params):
    # NCDHW (PyTorch) -> NDHWC (kernel layout)
    t = jnp.transpose(x_ncdhw, (0, 2, 3, 4, 1))
    t = conv_bn_relu_block(t, *params["block1"])
    t = max_pool3d_2(t)
    t = conv_bn_relu_block(t, *params["block2"])
    t = max_pool3d_2(t)
    t = conv_bn_relu_block(t, *params["block3"])
    t = max_pool3d_2(t)
    t = conv_bn_relu_block(t, *params["block4"])
    # AdaptiveAvgPool3d(1) + view(N, -1)
    t = jnp.mean(t, axis=(1, 2, 3))              # (N, 256)
    return t


if __name__ == "__main__":
    key = jax.random.PRNGKey(0)
    kx, kp = jax.random.split(key)
    # (N, C, D, H, W) = (2, 2, 8, 8, 8): spatial 8 -> 4 -> 2 -> 1 after pools.
    x = jax.random.normal(kx, (2, 2, 8, 8, 8), jnp.float32)
    params = init_params(kp)

    out = temporal_cnn_forward(x, params)
    out = jax.block_until_ready(out)
    assert out.shape == (2, 256), out.shape
    assert bool(jnp.all(jnp.isfinite(out)))
    print("KERNEL_OK")
</pallas_src>

<mosaic_0001>
module attributes {stable_mosaic.version = 11 : i64} {
  func.func @_conv_stats_kernel(%arg0: i32, %arg1: i32, %arg2: memref<512x54xbf16, #tpu.memory_space<vmem>>, %arg3: memref<54x64xbf16, #tpu.memory_space<vmem>>, %arg4: memref<512x64xf32, #tpu.memory_space<vmem>>, %arg5: memref<1x1x64xf32, #tpu.memory_space<vmem>>, %arg6: memref<1x1x64xf32, #tpu.memory_space<vmem>>) attributes {dimension_semantics = [#tpu.dimension_semantics<parallel>, #tpu.dimension_semantics<parallel>], iteration_bounds = array<i64: 2, 1>, scalar_prefetch = 0 : i64, scratch_operands = 0 : i64, tpu.core_type = #tpu.core_type<tc>, window_params = [{transform_indices = @transform_0, window_bounds = array<i64: 512, 54>}, {transform_indices = @transform_1, window_bounds = array<i64: 54, 64>}, {transform_indices = @transform_2, window_bounds = array<i64: 512, 64>}, {transform_indices = @transform_3, window_bounds = array<i64: 1, 1, 64>}, {transform_indices = @transform_4, window_bounds = array<i64: 1, 1, 64>}]} {
    %c0 = arith.constant 0 : index
    %c0_0 = arith.constant 0 : index
    %0 = vector.load %arg2[%c0, %c0_0] : memref<512x54xbf16, #tpu.memory_space<vmem>>, vector<512x54xbf16>
    %c0_1 = arith.constant 0 : index
    %c0_2 = arith.constant 0 : index
    %1 = vector.load %arg3[%c0_1, %c0_2] : memref<54x64xbf16, #tpu.memory_space<vmem>>, vector<54x64xbf16>
    %cst = arith.constant dense<0.000000e+00> : vector<512x64xf32>
    %2 = tpu.matmul %0, %1, %cst {dimension_numbers = #tpu.dot_dimension_numbers<[1], [0], [0], [1], [0, 0, 1, 1], [], []>} : vector<512x54xbf16>, vector<54x64xbf16>, vector<512x64xf32> -> vector<512x64xf32>
    %c0_3 = arith.constant 0 : index
    %c0_4 = arith.constant 0 : index
    %3 = vector.load %arg4[%c0_3, %c0_4] : memref<512x64xf32, #tpu.memory_space<vmem>>, vector<512x64xf32>
    tpu.vector_store %arg4[%c0_3, %c0_4], %2 {strides = array<i32>} : memref<512x64xf32, #tpu.memory_space<vmem>>, vector<512x64xf32>,
    %cst_5 = arith.constant dense<0.000000e+00> : vector<64xf32>
    %4 = vector.multi_reduction <add>, %2, %cst_5 [0] : vector<512x64xf32> to vector<64xf32>
    %5 = vector.shape_cast %4 : vector<64xf32> to vector<1x64xf32>
    %6 = vector.shape_cast %5 : vector<1x64xf32> to vector<1x1x64xf32>
    %c0_6 = arith.constant 0 : index
    %c0_7 = arith.constant 0 : index
    %c0_8 = arith.constant 0 : index
    %7 = vector.load %arg5[%c0_6, %c0_7, %c0_8] : memref<1x1x64xf32, #tpu.memory_space<vmem>>, vector<1x1x64xf32>
    tpu.vector_store %arg5[%c0_6, %c0_7, %c0_8], %6 {strides = array<i32>} : memref<1x1x64xf32, #tpu.memory_space<vmem>>, vector<1x1x64xf32>,
    %8 = arith.mulf %2, %2 : vector<512x64xf32>
    %cst_9 = arith.constant dense<0.000000e+00> : vector<64xf32>
    %9 = vector.multi_reduction <add>, %8, %cst_9 [0] : vector<512x64xf32> to vector<64xf32>
    %10 = vector.shape_cast %9 : vector<64xf32> to vector<1x64xf32>
    %11 = vector.shape_cast %10 : vector<1x64xf32> to vector<1x1x64xf32>
    %c0_10 = arith.constant 0 : index
    %c0_11 = arith.constant 0 : index
    %c0_12 = arith.constant 0 : index
    %12 = vector.load %arg6[%c0_10, %c0_11, %c0_12] : memref<1x1x64xf32, #tpu.memory_space<vmem>>, vector<1x1x64xf32>
    tpu.vector_store %arg6[%c0_10, %c0_11, %c0_12], %11 {strides = array<i32>} : memref<1x1x64xf32, #tpu.memory_space<vmem>>, vector<1x1x64xf32>,
    return
  }
  func.func @transform_0(%arg0: i32, %arg1: i32) -> (i32, i32) {
    %c0_i32 = arith.constant 0 : i32
    %c0_i32_0 = arith.constant 0 : i32
    return %arg0, %c0_i32 : i32, i32
  }
  func.func @transform_1(%arg0: i32, %arg1: i32) -> (i32, i32) {
    %c0_i32 = arith.constant 0 : i32
    %c0_i32_0 = arith.constant 0 : i32
    return %c0_i32, %arg1 : i32, i32
  }
  func.func @transform_2(%arg0: i32, %arg1: i32) -> (i32, i32) {
    %c0_i32 = arith.constant 0 : i32
    return %arg0, %arg1 : i32, i32
  }
  func.func @transform_3(%arg0: i32, %arg1: i32) -> (i32, i32, i32) {
    %c0_i32 = arith.constant 0 : i32
    %c0_i32_0 = arith.constant 0 : i32
    return %arg0, %c0_i32, %arg1 : i32, i32, i32
  }
  func.func @transform_4(%arg0: i32, %arg1: i32) -> (i32, i32, i32) {
    %c0_i32 = arith.constant 0 : i32
    %c0_i32_0 = arith.constant 0 : i32
    return %arg0, %c0_i32, %arg1 : i32, i32, i32
  }
}

</mosaic_0001>

<llo_original>
// kernel: tpu_custom_call.1
$region0: #{tpu_custom_call.1}
  #allocation0 [shape = 'u32[]', space=smem, size = 0x4, offset = 0x4, fixed_abs, tag = 'smem constant byte address 0x4 - core index']
  #allocation1 [shape = 'u32[72,128]{1,0:T(1,128)}', space=vmem, size = 0x9000, scoped, tag = 'internal scratch']
  %s0 = inlined_call_operand.vmem [shape: bf16[1024,54], index: 0, kind: input, shape index: {}]
  %s1 = inlined_call_operand.vmem [shape: bf16[54,64], index: 1, kind: input, shape index: {}]
  %s2 = inlined_call_operand.vmem [shape: f32[1024,64], index: 2, kind: output, shape index: {0}]
  %s3 = inlined_call_operand.hbm [shape: f32[2,1,64], index: 3, kind: output, shape index: {1}]
  %s4 = inlined_call_operand.hbm [shape: f32[2,1,64], index: 4, kind: output, shape index: {2}]
  %5 = xla_tuple %s2, %s3, %s4
  %s6 = sld [smem:[#allocation0]]
  $region57: #{tpu_custom_call.1} parent=0
    _
  %s8 = ssub.s32 1, %s6
  %s9 = scalar_select 0, %s8, %s6
  $region1: #{tpu_custom_call.1} parent=0
    #allocation2 [shape = 'u8[1024]{0}', space=vmem, size = 0x400, scoped, tag = 'output window, operand 1']
    #allocation3 [shape = 's32[2]{0}', space=sflag, size = 0x8, scoped, tag = 'scoped memory for tpu_custom_call.1']
    #allocation4 [shape = 'u8[1024]{0}', space=vmem, size = 0x400, scoped, tag = 'output window, operand 2']
    #allocation5 [shape = 's32[2]{0}', space=sflag, size = 0x8, scoped, tag = 'scoped memory for tpu_custom_call.1']
    %10 = vsyncpa [#allocation3], 0
    %s11 = scalar_lea.sflag [#allocation3], 1
    %12 = vsyncpa %s11, 0
    %13 = vsyncpa [#allocation5], 0
    %s14 = scalar_lea.sflag [#allocation5], 1
    %15 = vsyncpa %s14, 0
    loop: start=0, step=1, limit=4
    $region2: #{tpu_custom_call.1} parent=1 // loop_pre_header
      _
    $region3: #{tpu_custom_call.1} parent=1 // loop_header
      %s17 = sphi 0, %s21
      %p18 = scmp.ge.s32.totalorder %s17, 4
      %s24 = sphi 0, %s36
      %s25 = sphi 0, %s32
      %s26 = sphi 0, %s24
      %s27 = sphi 0, %s25
      %s28 = sphi 0, %s26
      %s29 = sphi 0, %s27
      %s39 = sphi 0, %s41
      %s42 = sphi 0, %s39
      %s43 = sphi 0, %s42
      %s59 = sphi 0, %s43
      %s65 = sphi 0, %s67
      %s68 = sphi 0, %s65
      %s69 = sphi 0, %s68
      %s85 = sphi 0, %s69
      %s93 = sphi 0, %s95
      %s96 = sphi 0, %s93
      %s97 = sphi 0, %s96
      %s113 = sphi 0, %s97
      %s121 = sphi 0, %s123
      %s124 = sphi 0, %s121
      %s125 = sphi 0, %s124
      %s141 = sphi 0, %s125
      %s149 = sphi 0, %s151
      %s152 = sphi 0, %s149
      %s153 = sphi 0, %s152
      %s169 = sphi 0, %s153
    $region4: #{tpu_custom_call.1} parent=1 // loop_header_branch
      %20 = sbr.rel (%p18) target = $region8
    $region5: #{tpu_custom_call.1} parent=1 // loop_body
      %s22 = ssub.s32 %s17, 1
      %s23 = ssub.s32 %s17, 2
      %s30 = sadd.s32 1, %s25
      %p31 = scmp.ge.s32.totalorder %s30, 1
      %s32 = scalar_select %p31, 0, %s30
      %s33 = sadd.s32 1, %s24
      %s34 = scalar_select %p31, %s33, %s24
      %p35 = scmp.ge.s32.totalorder %s34, 2
      %s36 = scalar_select %p35, 0, %s34
      %s37 = ssub.s32 %s24, %s36
      %p38 = scmp.eq.s32.totalorder %s37, 0
      %s40 = sadd.s32 %s39, 1
      %s41 = scalar_select %p38, %s39, %s40
      %p44 = pneg %p38
      %p45 = scmp.eq.s32.totalorder %s17, 1
      %p46 = por %p44, %p45
      %p47 = scmp.ne.s32.totalorder %s39, %s42
      %p48 = scmp.eq.s32.totalorder %s17, 0
      %p49 = por %p47, %p48
      %p50 = scmp.ne.s32.totalorder %s39, %s42
      %p51 = scmp.eq.s32.totalorder %s22, 1
      %p52 = por %p50, %p51
      %p53 = scmp.ne.s32.totalorder %s42, %s43
      %p54 = scmp.eq.s32.totalorder %s22, 0
      %p55 = por %p53, %p54
      %p56 = scmp.ne.s32.totalorder %s42, %s43
      %p57 = scmp.eq.s32.totalorder %s23, 1
      %p58 = por %p56, %p57
      %p60 = scmp.ne.s32.totalorder %s43, %s59
      %p61 = scmp.eq.s32.totalorder %s23, 0
      %p62 = por %p60, %p61
      %s63 = ssub.s32 %s25, %s32
      %p64 = scmp.eq.s32.totalorder %s63, 0
      %s66 = sadd.s32 %s65, 1
      %s67 = scalar_select %p64, %s65, %s66
      %p70 = pneg %p64
      %p71 = scmp.eq.s32.totalorder %s17, 1
      %p72 = por %p70, %p71
      %p73 = scmp.ne.s32.totalorder %s65, %s68
      %p74 = scmp.eq.s32.totalorder %s17, 0
      %p75 = por %p73, %p74
      %p76 = scmp.ne.s32.totalorder %s65, %s68
      %p77 = scmp.eq.s32.totalorder %s22, 1
      %p78 = por %p76, %p77
      %p79 = scmp.ne.s32.totalorder %s68, %s69
      %p80 = scmp.eq.s32.totalorder %s22, 0
      %p81 = por %p79, %p80
      %p82 = scmp.ne.s32.totalorder %s68, %s69
      %p83 = scmp.eq.s32.totalorder %s23, 1
      %p84 = por %p82, %p83
      %p86 = scmp.ne.s32.totalorder %s69, %s85
      %p87 = scmp.eq.s32.totalorder %s23, 0
      %p88 = por %p86, %p87
      %s89 = ssub.s32 %s24, %s36
      %s90 = ssub.s32 %s25, %s32
      %s91 = sor.u32 %s89, %s90
      %p92 = scmp.eq.s32.totalorder %s91, 0
      %s94 = sadd.s32 %s93, 1
      %s95 = scalar_select %p92, %s93, %s94
      %p98 = pneg %p92
      %p99 = scmp.eq.s32.totalorder %s17, 1
      %p100 = por %p98, %p99
      %p101 = scmp.ne.s32.totalorder %s93, %s96
      %p102 = scmp.eq.s32.totalorder %s17, 0
      %p103 = por %p101, %p102
      %p104 = scmp.ne.s32.totalorder %s93, %s96
      %p105 = scmp.eq.s32.totalorder %s22, 1
      %p106 = por %p104, %p105
      %p107 = scmp.ne.s32.totalorder %s96, %s97
      %p108 = scmp.eq.s32.totalorder %s22, 0
      %p109 = por %p107, %p108
      %p110 = scmp.ne.s32.totalorder %s96, %s97
      %p111 = scmp.eq.s32.totalorder %s23, 1
      %p112 = por %p110, %p111
      %p114 = scmp.ne.s32.totalorder %s97, %s113
      %p115 = scmp.eq.s32.totalorder %s23, 0
      %p116 = por %p114, %p115
      %s117 = ssub.s32 %s24, %s36
      %s118 = ssub.s32 %s25, %s32
      %s119 = sor.u32 %s117, %s118
      %p120 = scmp.eq.s32.totalorder %s119, 0
      %s122 = sadd.s32 %s121, 1
      %s123 = scalar_select %p120, %s121, %s122
      %p126 = pneg %p120
      %p127 = scmp.eq.s32.totalorder %s17, 1
      %p128 = por %p126, %p127
      %p129 = scmp.ne.s32.totalorder %s121, %s124
      %p130 = scmp.eq.s32.totalorder %s17, 0
      %p131 = por %p129, %p130
      %p132 = scmp.ne.s32.totalorder %s121, %s124
      %p133 = scmp.eq.s32.totalorder %s22, 1
      %p134 = por %p132, %p133
      %p135 = scmp.ne.s32.totalorder %s124, %s125
      %p136 = scmp.eq.s32.totalorder %s22, 0
      %p137 = por %p135, %p136
      %p138 = scmp.ne.s32.totalorder %s124, %s125
      %p139 = scmp.eq.s32.totalorder %s23, 1
      %p140 = por %p138, %p139
      %p142 = scmp.ne.s32.totalorder %s125, %s141
      %p143 = scmp.eq.s32.totalorder %s23, 0
      %p144 = por %p142, %p143
      %s145 = ssub.s32 %s24, %s36
      %s146 = ssub.s32 %s25, %s32
      %s147 = sor.u32 %s145, %s146
      %p148 = scmp.eq.s32.totalorder %s147, 0
      %s150 = sadd.s32 %s149, 1
      %s151 = scalar_select %p148, %s149, %s150
      %p154 = pneg %p148
      %p155 = scmp.eq.s32.totalorder %s17, 1
      %p156 = por %p154, %p155
      %p157 = scmp.ne.s32.totalorder %s149, %s152
      %p158 = scmp.eq.s32.totalorder %s17, 0
      %p159 = por %p157, %p158
      %p160 = scmp.ne.s32.totalorder %s149, %s152
      %p161 = scmp.eq.s32.totalorder %s22, 1
      %p162 = por %p160, %p161
      %p163 = scmp.ne.s32.totalorder %s152, %s153
      %p164 = scmp.eq.s32.totalorder %s22, 0
      %p165 = por %p163, %p164
      %p166 = scmp.ne.s32.totalorder %s152, %s153
      %p167 = scmp.eq.s32.totalorder %s23, 1
      %p168 = por %p166, %p167
      %p170 = scmp.ne.s32.totalorder %s153, %s169
      %p171 = scmp.eq.s32.totalorder %s23, 0
      %p172 = por %p170, %p171
      %p173 = scmp.le.s32.totalorder 1, %s17
      %p174 = scmp.lt.s32.totalorder %s17, 3
      %p175 = pnand %p173, %p174
      %p176 = pneg %p175
      // Predicated region
      $region9: #{tpu_custom_call.1} parent=5 // pred_check
        _
      $region10: #{tpu_custom_call.1} parent=5 // pred_check_branch
        %178 = sbr.rel (%p175) target = $region12
      $region11: #{tpu_custom_call.1} parent=5 // pred_region
        %s179 = ssub.s32 %s17, 1
        // Predicated region
        $region13: #{tpu_custom_call.1} parent=11 // pred_check
          %p180 = pneg %p81
        $region14: #{tpu_custom_call.1} parent=11 // pred_check_branch
          %182 = sbr.rel (%p180) target = $region16
        $region15: #{tpu_custom_call.1} parent=11 // pred_region
          %p183 = scmp.lt.s32.totalorder %s27, 0
          %s184 = scalar_select %p183, %s27, 0
          %s185 = smul.addr %s184, 4
          %s186 = scalar_lea.vmem %s1, %s185
        $region16: #{tpu_custom_call.1} parent=11 // pred_fallthru
          _
      $region12: #{tpu_custom_call.1} parent=5 // pred_fallthru
        _
      %p187 = scmp.lt.s32.totalorder %s17, 2
      // Predicated region
      $region17: #{tpu_custom_call.1} parent=5 // pred_check
        %p188 = pneg %p187
      $region18: #{tpu_custom_call.1} parent=5 // pred_check_branch
        %190 = sbr.rel (%p188) target = $region20
      $region19: #{tpu_custom_call.1} parent=5 // pred_region
        // Predicated region
        $region21: #{tpu_custom_call.1} parent=19 // pred_check
          %p191 = pneg %p49
        $region22: #{tpu_custom_call.1} parent=19 // pred_check_branch
          %193 = sbr.rel (%p191) target = $region24
        $region23: #{tpu_custom_call.1} parent=19 // pred_region
          %s194 = smul.u32 64, %s24
          %p195 = scmp.lt.s32.totalorder %s194, 127
          %s196 = scalar_select %p195, %s194, 127
          %s197 = smul.addr %s196, 4
          %s198 = scalar_lea.vmem %s0, %s197
          %s199 = smul.u32 64, %s24
        $region24: #{tpu_custom_call.1} parent=19 // pred_fallthru
          _
      $region20: #{tpu_custom_call.1} parent=5 // pred_fallthru
        _
      %p200 = scmp.le.s32.totalorder 1, %s17
      %p201 = scmp.lt.s32.totalorder %s17, 3
      %p202 = pnand %p200, %p201
      %p203 = pneg %p202
      // Predicated region
      $region25: #{tpu_custom_call.1} parent=5 // pred_check
        _
      $region26: #{tpu_custom_call.1} parent=5 // pred_check_branch
        %205 = sbr.rel (%p202) target = $region28
      $region27: #{tpu_custom_call.1} parent=5 // pred_region
        %s206 = ssub.s32 %s17, 1
        %s207 = smul.u32 64, %s26
        %p208 = scmp.lt.s32.totalorder %s207, 127
        %s209 = scalar_select %p208, %s207, 127
        %s210 = smul.addr %s209, 4
        %s211 = scalar_lea.vmem %s0, %s210
        %p212 = pneg %p55
        %p213 = pneg %p52
        %p214 = scmp.lt.s32.totalorder %s27, 0
        %s215 = scalar_select %p214, %s27, 0
        %s216 = smul.addr %s215, 4
        %s217 = scalar_lea.vmem %s1, %s216
        %p218 = pneg %p81
        %p219 = pneg %p78
        %p220 = pneg %p109
        %p221 = pneg %p106
        %s222 = smul.u32 64, %s26
        %p223 = scmp.lt.s32.totalorder %s222, 127
        %s224 = scalar_select %p223, %s222, 127
        %p225 = scmp.lt.s32.totalorder %s27, 0
        %s226 = scalar_select %p225, %s27, 0
        %s227 = sadd.s32 %s226, %s224
        %s228 = smul.addr %s227, 8
        %s229 = scalar_lea.vmem %s2, %s228
        %p230 = pneg %p137
        %p231 = pneg %p134
        %s232 = sand.u32 %s124, 1
        %s233 = scalar_lea.sflag [#allocation3], %s232
        %s234 = sand.u32 %s124, 1
        %s235 = scalar_lea.vmem [#allocation2], %s234
        %p236 = pneg %p165
        %p237 = pneg %p162
        %s238 = sand.u32 %s152, 1
        %s239 = scalar_lea.sflag [#allocation5], %s238
        %s240 = sand.u32 %s152, 1
        %s241 = scalar_lea.vmem [#allocation4], %s240
        %s242 = smul.u32 64, %s26
        %p243 = scmp.lt.s32.totalorder %s242, 127
        %s244 = scalar_select %p243, %s242, 127
        %s245 = smul.addr %s244, 4
        %s246 = scalar_lea.vmem %s0, %s245
        %s247 = smul.u32 64, %s26
        %p248 = scmp.lt.s32.totalorder %s27, 0
        %s249 = scalar_select %p248, %s27, 0
        %s250 = smul.addr %s249, 4
        %s251 = scalar_lea.vmem %s1, %s250
        %s252 = smul.u32 64, %s26
        %p253 = scmp.lt.s32.totalorder %s252, 127
        %s254 = scalar_select %p253, %s252, 127
        %p255 = scmp.lt.s32.totalorder %s27, 0
        %s256 = scalar_select %p255, %s27, 0
        %s257 = sadd.s32 %s256, %s254
        %s258 = smul.addr %s257, 8
        %s259 = scalar_lea.vmem %s2, %s258
        %s260 = smul.u32 64, %s26
        %v262 = vld [vmem:[%s246] sm:$0xf]
        %v263 = vld [vmem:[%s246 + $0x4] sm:$0xf]
        %v264 = vld [vmem:[%s246 + $0x8] sm:$0xf]
        %v265 = vld [vmem:[%s246 + $0xc] sm:$0xf]
        %v266 = vld [vmem:[%s246 + $0x10] sm:$0xf]
        %v267 = vld [vmem:[%s246 + $0x14] sm:$0xf]
        %v268 = vld [vmem:[%s246 + $0x18] sm:$0xf]
        %v269 = vld [vmem:[%s246 + $0x1c] sm:$0xf]
        %v270 = vld [vmem:[%s246 + $0x20] sm:$0xf]
        %v271 = vld [vmem:[%s246 + $0x24] sm:$0xf]
        %v272 = vld [vmem:[%s246 + $0x28] sm:$0xf]
        %v273 = vld [vmem:[%s246 + $0x2c] sm:$0xf]
        %v274 = vld [vmem:[%s246 + $0x30] sm:$0xf]
        %v275 = vld [vmem:[%s246 + $0x34] sm:$0xf]
        %v276 = vld [vmem:[%s246 + $0x38] sm:$0xf]
        %v277 = vld [vmem:[%s246 + $0x3c] sm:$0xf]
        %v278 = vld [vmem:[%s246 + $0x40] sm:$0xf]
        %v279 = vld [vmem:[%s246 + $0x44] sm:$0xf]
        %v280 = vld [vmem:[%s246 + $0x48] sm:$0xf]
        %v281 = vld [vmem:[%s246 + $0x4c] sm:$0xf]
        %v282 = vld [vmem:[%s246 + $0x50] sm:$0xf]
        %v283 = vld [vmem:[%s246 + $0x54] sm:$0xf]
        %v284 = vld [vmem:[%s246 + $0x58] sm:$0xf]
        %v285 = vld [vmem:[%s246 + $0x5c] sm:$0xf]
        %v286 = vld [vmem:[%s246 + $0x60] sm:$0xf]
        %v287 = vld [vmem:[%s246 + $0x64] sm:$0xf]
        %v288 = vld [vmem:[%s246 + $0x68] sm:$0xf]
        %v289 = vld [vmem:[%s246 + $0x6c] sm:$0xf]
        %v290 = vld [vmem:[%s246 + $0x70] sm:$0xf]
        %v291 = vld [vmem:[%s246 + $0x74] sm:$0xf]
        %v292 = vld [vmem:[%s246 + $0x78] sm:$0xf]
        %v293 = vld [vmem:[%s246 + $0x7c] sm:$0xf]
        %v294 = vld [vmem:[%s246 + $0x80] sm:$0xf]
        %v295 = vld [vmem:[%s246 + $0x84] sm:$0xf]
        %v296 = vld [vmem:[%s246 + $0x88] sm:$0xf]
        %v297 = vld [vmem:[%s246 + $0x8c] sm:$0xf]
        %v298 = vld [vmem:[%s246 + $0x90] sm:$0xf]
        %v299 = vld [vmem:[%s246 + $0x94] sm:$0xf]
        %v300 = vld [vmem:[%s246 + $0x98] sm:$0xf]
        %v301 = vld [vmem:[%s246 + $0x9c] sm:$0xf]
        %v302 = vld [vmem:[%s246 + $0xa0] sm:$0xf]
        %v303 = vld [vmem:[%s246 + $0xa4] sm:$0xf]
        %v304 = vld [vmem:[%s246 + $0xa8] sm:$0xf]
        %v305 = vld [vmem:[%s246 + $0xac] sm:$0xf]
        %v306 = vld [vmem:[%s246 + $0xb0] sm:$0xf]
        %v307 = vld [vmem:[%s246 + $0xb4] sm:$0xf]
        %v308 = vld [vmem:[%s246 + $0xb8] sm:$0xf]
        %v309 = vld [vmem:[%s246 + $0xbc] sm:$0xf]
        %v310 = vld [vmem:[%s246 + $0xc0] sm:$0xf]
        %v311 = vld [vmem:[%s246 + $0xc4] sm:$0xf]
        %v312 = vld [vmem:[%s246 + $0xc8] sm:$0xf]
        %v313 = vld [vmem:[%s246 + $0xcc] sm:$0xf]
        %v314 = vld [vmem:[%s246 + $0xd0] sm:$0xf]
        %v315 = vld [vmem:[%s246 + $0xd4] sm:$0xf]
        %v316 = vld [vmem:[%s246 + $0xd8] sm:$0xf]
        %v317 = vld [vmem:[%s246 + $0xdc] sm:$0xf]
        %v318 = vld [vmem:[%s246 + $0xe0] sm:$0xf]
        %v319 = vld [vmem:[%s246 + $0xe4] sm:$0xf]
        %v320 = vld [vmem:[%s246 + $0xe8] sm:$0xf]
        %v321 = vld [vmem:[%s246 + $0xec] sm:$0xf]
        %v322 = vld [vmem:[%s246 + $0xf0] sm:$0xf]
        %v323 = vld [vmem:[%s246 + $0xf4] sm:$0xf]
        %v324 = vld [vmem:[%s246 + $0xf8] sm:$0xf]
        %v325 = vld [vmem:[%s246 + $0xfc] sm:$0xf]
        %v326 = vld [vmem:[%s251] sm:$0xf]
        %v327 = vld [vmem:[%s251 + $0x4] sm:$0xf]
        %v328 = vld [vmem:[%s251 + $0x8] sm:$0xf]
        %v329 = vld [vmem:[%s251 + $0xc] sm:$0xf]
        %v330 = vld [vmem:[%s251 + $0x10] sm:$0xf]
        %v331 = vld [vmem:[%s251 + $0x14] sm:$0xf]
        %v332 = vld [vmem:[%s251 + $0x18] sm:$0x7]
        %v397 = vunpack.c.l.b16 %v262
        %v398 = vunpack.c.l.b16 %v263
        %v399 = vunpack.c.l.b16 %v264
        %v400 = vunpack.c.l.b16 %v265
        %v401 = vunpack.c.l.b16 %v266
        %v402 = vunpack.c.l.b16 %v267
        %v403 = vunpack.c.l.b16 %v268
        %v404 = vunpack.c.l.b16 %v269
        %v405 = vunpack.c.l.b16 %v270
        %v406 = vunpack.c.l.b16 %v271
        %v407 = vunpack.c.l.b16 %v272
        %v408 = vunpack.c.l.b16 %v273
        %v409 = vunpack.c.l.b16 %v274
        %v410 = vunpack.c.l.b16 %v275
        %v411 = vunpack.c.l.b16 %v276
        %v412 = vunpack.c.l.b16 %v277
        %v413 = vunpack.c.l.b16 %v278
        %v414 = vunpack.c.l.b16 %v279
        %v415 = vunpack.c.l.b16 %v280
        %v416 = vunpack.c.l.b16 %v281
        %v417 = vunpack.c.l.b16 %v282
        %v418 = vunpack.c.l.b16 %v283
        %v419 = vunpack.c.l.b16 %v284
        %v420 = vunpack.c.l.b16 %v285
        %v421 = vunpack.c.l.b16 %v286
        %v422 = vunpack.c.l.b16 %v287
        %v423 = vunpack.c.l.b16 %v288
        %v424 = vunpack.c.l.b16 %v289
        %v425 = vunpack.c.l.b16 %v290
        %v426 = vunpack.c.l.b16 %v291
        %v427 = vunpack.c.l.b16 %v292
        %v428 = vunpack.c.l.b16 %v293
        %v429 = vunpack.c.l.b16 %v294
        %v430 = vunpack.c.l.b16 %v295
        %v431 = vunpack.c.l.b16 %v296
        %v432 = vunpack.c.l.b16 %v297
        %v433 = vunpack.c.l.b16 %v298
        %v434 = vunpack.c.l.b16 %v299
        %v435 = vunpack.c.l.b16 %v300
        %v436 = vunpack.c.l.b16 %v301
        %v437 = vunpack.c.l.b16 %v302
        %v438 = vunpack.c.l.b16 %v303
        %v439 = vunpack.c.l.b16 %v304
        %v440 = vunpack.c.l.b16 %v305
        %v441 = vunpack.c.l.b16 %v306
        %v442 = vunpack.c.l.b16 %v307
        %v443 = vunpack.c.l.b16 %v308
        %v444 = vunpack.c.l.b16 %v309
        %v445 = vunpack.c.l.b16 %v310
        %v446 = vunpack.c.l.b16 %v311
        %v447 = vunpack.c.l.b16 %v312
        %v448 = vunpack.c.l.b16 %v313
        %v449 = vunpack.c.l.b16 %v314
        %v450 = vunpack.c.l.b16 %v315
        %v451 = vunpack.c.l.b16 %v316
        %v452 = vunpack.c.l.b16 %v317
        %v453 = vunpack.c.l.b16 %v318
        %v454 = vunpack.c.l.b16 %v319
        %v455 = vunpack.c.l.b16 %v320
        %v456 = vunpack.c.l.b16 %v321
        %v457 = vunpack.c.l.b16 %v322
        %v458 = vunpack.c.l.b16 %v323
        %v459 = vunpack.c.l.b16 %v324
        %v460 = vunpack.c.l.b16 %v325
        %v461 = vpack.c.b16 %v398, %v397
        %v462 = vpack.c.b16 %v400, %v399
        %v463 = vpack.c.b16 %v402, %v401
        %v464 = vpack.c.b16 %v404, %v403
        %v465 = vpack.c.b16 %v406, %v405
        %v466 = vpack.c.b16 %v408, %v407
        %v467 = vpack.c.b16 %v410, %v409
        %v468 = vpack.c.b16 %v412, %v411
        %v469 = vpack.c.b16 %v414, %v413
        %v470 = vpack.c.b16 %v416, %v415
        %v471 = vpack.c.b16 %v418, %v417
        %v472 = vpack.c.b16 %v420, %v419
        %v473 = vpack.c.b16 %v422, %v421
        %v474 = vpack.c.b16 %v424, %v423
        %v475 = vpack.c.b16 %v426, %v425
        %v476 = vpack.c.b16 %v428, %v427
        %v477 = vpack.c.b16 %v430, %v429
        %v478 = vpack.c.b16 %v432, %v431
        %v479 = vpack.c.b16 %v434, %v433
        %v480 = vpack.c.b16 %v436, %v435
        %v481 = vpack.c.b16 %v438, %v437
        %v482 = vpack.c.b16 %v440, %v439
        %v483 = vpack.c.b16 %v442, %v441
        %v484 = vpack.c.b16 %v444, %v443
        %v485 = vpack.c.b16 %v446, %v445
        %v486 = vpack.c.b16 %v448, %v447
        %v487 = vpack.c.b16 %v450, %v449
        %v488 = vpack.c.b16 %v452, %v451
        %v489 = vpack.c.b16 %v454, %v453
        %v490 = vpack.c.b16 %v456, %v455
        %v491 = vpack.c.b16 %v458, %v457
        %v492 = vpack.c.b16 %v460, %v459
        %v500 = vunpack.c.l.b16 %v326
        %v501 = vunpack.c.l.b16 %v327
        %v502 = vunpack.c.l.b16 %v328
        %v503 = vunpack.c.l.b16 %v329
        %v504 = vunpack.c.l.b16 %v330
        %v505 = vunpack.c.l.b16 %v331
        %v506 = vunpack.c.l.b16 %v332
        %v507 = vpack.c.b16 %v501, %v500
        %v508 = vpack.c.b16 %v503, %v502
        %v509 = vpack.c.b16 %v505, %v504
        %v510 = vpack.c.b16 %v506, %v506
        %vm514 = vcmask 441344
        %v516 = vsel %vm514, %v461, 0
        %v519 = vsel %vm514, %v462, 0
        %v522 = vsel %vm514, %v463, 0
        %v525 = vsel %vm514, %v464, 0
        %v528 = vsel %vm514, %v465, 0
        %v531 = vsel %vm514, %v466, 0
        %v534 = vsel %vm514, %v467, 0
        %v537 = vsel %vm514, %v468, 0
        %v540 = vsel %vm514, %v469, 0
        %v543 = vsel %vm514, %v470, 0
        %v546 = vsel %vm514, %v471, 0
        %v549 = vsel %vm514, %v472, 0
        %v552 = vsel %vm514, %v473, 0
        %v555 = vsel %vm514, %v474, 0
        %v558 = vsel %vm514, %v475, 0
        %v561 = vsel %vm514, %v476, 0
        %v564 = vsel %vm514, %v477, 0
        %v567 = vsel %vm514, %v478, 0
        %v570 = vsel %vm514, %v479, 0
        %v573 = vsel %vm514, %v480, 0
        %v576 = vsel %vm514, %v481, 0
        %v579 = vsel %vm514, %v482, 0
        %v582 = vsel %vm514, %v483, 0
        %v585 = vsel %vm514, %v484, 0
        %v588 = vsel %vm514, %v485, 0
        %v591 = vsel %vm514, %v486, 0
        %v594 = vsel %vm514, %v487, 0
        %v597 = vsel %vm514, %v488, 0
        %v600 = vsel %vm514, %v489, 0
        %v603 = vsel %vm514, %v490, 0
        %v606 = vsel %vm514, %v491, 0
        %v609 = vsel %vm514, %v492, 0
        %vm611 = vcmask 1042432
        %v613 = vsel %vm611, %v510, 0
        %615 = vmatpush.bf16.msra.mxu0 0
        %616 = vmatpush.bf16.msra.mxu0 0
        %617 = vmatpush.bf16.msra.mxu0 0
        %618 = vmatpush.bf16.msra.mxu0 0
        %619 = vmatpush.bf16.msra.mxu0 %v613
        %620 = vmatpush.bf16.msra.mxu0 %v509
        %621 = vmatpush.bf16.msra.mxu0 %v508
        %622 = vmatpush.bf16.msra.mxu0 %v507
        %623 = vmatmul.bf16.gmra.mxu0 %v516
        %v624 = vpop.f32.mrf.mxu0
        %v625 = vadd.f32 0.0, %v624
        %v626 = vpop.f32.mrf.mxu0
        %v627 = vadd.f32 0.0, %v626
        %628 = vmatmul.bf16.gmra.mxu0 %v519
        %v629 = vpop.f32.mrf.mxu0
        %v630 = vadd.f32 0.0, %v629
        %v631 = vpop.f32.mrf.mxu0
        %v632 = vadd.f32 0.0, %v631
        %633 = vmatmul.bf16.gmra.mxu0 %v522
        %v634 = vpop.f32.mrf.mxu0
        %v635 = vadd.f32 0.0, %v634
        %v636 = vpop.f32.mrf.mxu0
        %v637 = vadd.f32 0.0, %v636
        %638 = vmatmul.bf16.gmra.mxu0 %v525
        %v639 = vpop.f32.mrf.mxu0
        %v640 = vadd.f32 0.0, %v639
        %v641 = vpop.f32.mrf.mxu0
        %v642 = vadd.f32 0.0, %v641
        %643 = vmatmul.bf16.gmra.mxu0 %v528
        %v644 = vpop.f32.mrf.mxu0
        %v645 = vadd.f32 0.0, %v644
        %v646 = vpop.f32.mrf.mxu0
        %v647 = vadd.f32 0.0, %v646
        %648 = vmatmul.bf16.gmra.mxu0 %v531
        %v649 = vpop.f32.mrf.mxu0
        %v650 = vadd.f32 0.0, %v649
        %v651 = vpop.f32.mrf.mxu0
        %v652 = vadd.f32 0.0, %v651
        %653 = vmatmul.bf16.gmra.mxu0 %v534
        %v654 = vpop.f32.mrf.mxu0
        %v655 = vadd.f32 0.0, %v654
        %v656 = vpop.f32.mrf.mxu0
        %v657 = vadd.f32 0.0, %v656
        %658 = vmatmul.bf16.gmra.mxu0 %v537
        %v659 = vpop.f32.mrf.mxu0
        %v660 = vadd.f32 0.0, %v659
        %v661 = vpop.f32.mrf.mxu0
        %v662 = vadd.f32 0.0, %v661
        %663 = vmatmul.bf16.gmra.mxu0 %v540
        %v664 = vpop.f32.mrf.mxu0
        %v665 = vadd.f32 0.0, %v664
        %v666 = vpop.f32.mrf.mxu0
        %v667 = vadd.f32 0.0, %v666
        %668 = vmatmul.bf16.gmra.mxu0 %v543
        %v669 = vpop.f32.mrf.mxu0
        %v670 = vadd.f32 0.0, %v669
        %v671 = vpop.f32.mrf.mxu0
        %v672 = vadd.f32 0.0, %v671
        %673 = vmatmul.bf16.gmra.mxu0 %v546
        %v674 = vpop.f32.mrf.mxu0
        %v675 = vadd.f32 0.0, %v674
        %v676 = vpop.f32.mrf.mxu0
        %v677 = vadd.f32 0.0, %v676
        %678 = vmatmul.bf16.gmra.mxu0 %v549
        %v679 = vpop.f32.mrf.mxu0
        %v680 = vadd.f32 0.0, %v679
        %v681 = vpop.f32.mrf.mxu0
        %v682 = vadd.f32 0.0, %v681
        %683 = vmatmul.bf16.gmra.mxu0 %v552
        %v684 = vpop.f32.mrf.mxu0
        %v685 = vadd.f32 0.0, %v684
        %v686 = vpop.f32.mrf.mxu0
        %v687 = vadd.f32 0.0, %v686
        %688 = vmatmul.bf16.gmra.mxu0 %v555
        %v689 = vpop.f32.mrf.mxu0
        %v690 = vadd.f32 0.0, %v689
        %v691 = vpop.f32.mrf.mxu0
        %v692 = vadd.f32 0.0, %v691
        %693 = vmatmul.bf16.gmra.mxu0 %v558
        %v694 = vpop.f32.mrf.mxu0
        %v695 = vadd.f32 0.0, %v694
        %v696 = vpop.f32.mrf.mxu0
        %v697 = vadd.f32 0.0, %v696
        %698 = vmatmul.bf16.gmra.mxu0 %v561
        %v699 = vpop.f32.mrf.mxu0
        %v700 = vadd.f32 0.0, %v699
        %v701 = vpop.f32.mrf.mxu0
        %v702 = vadd.f32 0.0, %v701
        %703 = vmatmul.bf16.gmra.mxu0 %v564
        %v704 = vpop.f32.mrf.mxu0
        %v705 = vadd.f32 0.0, %v704
        %v706 = vpop.f32.mrf.mxu0
        %v707 = vadd.f32 0.0, %v706
        %708 = vmatmul.bf16.gmra.mxu0 %v567
        %v709 = vpop.f32.mrf.mxu0
        %v710 = vadd.f32 0.0, %v709
        %v711 = vpop.f32.mrf.mxu0
        %v712 = vadd.f32 0.0, %v711
        %713 = vmatmul.bf16.gmra.mxu0 %v570
        %v714 = vpop.f32.mrf.mxu0
        %v715 = vadd.f32 0.0, %v714
        %v716 = vpop.f32.mrf.mxu0
        %v717 = vadd.f32 0.0, %v716
        %718 = vmatmul.bf16.gmra.mxu0 %v573
        %v719 = vpop.f32.mrf.mxu0
        %v720 = vadd.f32 0.0, %v719
        %v721 = vpop.f32.mrf.mxu0
        %v722 = vadd.f32 0.0, %v721
        %723 = vmatmul.bf16.gmra.mxu0 %v576
        %v724 = vpop.f32.mrf.mxu0
        %v725 = vadd.f32 0.0, %v724
        %v726 = vpop.f32.mrf.mxu0
        %v727 = vadd.f32 0.0, %v726
        %728 = vmatmul.bf16.gmra.mxu0 %v579
        %v729 = vpop.f32.mrf.mxu0
        %v730 = vadd.f32 0.0, %v729
        %v731 = vpop.f32.mrf.mxu0
        %v732 = vadd.f32 0.0, %v731
        %733 = vmatmul.bf16.gmra.mxu0 %v582
        %v734 = vpop.f32.mrf.mxu0
        %v735 = vadd.f32 0.0, %v734
        %v736 = vpop.f32.mrf.mxu0
        %v737 = vadd.f32 0.0, %v736
        %738 = vmatmul.bf16.gmra.mxu0 %v585
        %v739 = vpop.f32.mrf.mxu0
        %v740 = vadd.f32 0.0, %v739
        %v741 = vpop.f32.mrf.mxu0
        %v742 = vadd.f32 0.0, %v741
        %743 = vmatmul.bf16.gmra.mxu0 %v588
        %v744 = vpop.f32.mrf.mxu0
        %v745 = vadd.f32 0.0, %v744
        %v746 = vpop.f32.mrf.mxu0
        %v747 = vadd.f32 0.0, %v746
        %748 = vmatmul.bf16.gmra.mxu0 %v591
        %v749 = vpop.f32.mrf.mxu0
        %v750 = vadd.f32 0.0, %v749
        %v751 = vpop.f32.mrf.mxu0
        %v752 = vadd.f32 0.0, %v751
        %753 = vmatmul.bf16.gmra.mxu0 %v594
        %v754 = vpop.f32.mrf.mxu0
        %v755 = vadd.f32 0.0, %v754
        %v756 = vpop.f32.mrf.mxu0
        %v757 = vadd.f32 0.0, %v756
        %758 = vmatmul.bf16.gmra.mxu0 %v597
        %v759 = vpop.f32.mrf.mxu0
        %v760 = vadd.f32 0.0, %v759
        %v761 = vpop.f32.mrf.mxu0
        %v762 = vadd.f32 0.0, %v761
        %763 = vmatmul.bf16.gmra.mxu0 %v600
        %v764 = vpop.f32.mrf.mxu0
        %v765 = vadd.f32 0.0, %v764
        %v766 = vpop.f32.mrf.mxu0
        %v767 = vadd.f32 0.0, %v766
        %768 = vmatmul.bf16.gmra.mxu0 %v603
        %v769 = vpop.f32.mrf.mxu0
        %v770 = vadd.f32 0.0, %v769
        %v771 = vpop.f32.mrf.mxu0
        %v772 = vadd.f32 0.0, %v771
        %773 = vmatmul.bf16.gmra.mxu0 %v606
        %v774 = vpop.f32.mrf.mxu0
        %v775 = vadd.f32 0.0, %v774
        %v776 = vpop.f32.mrf.mxu0
        %v777 = vadd.f32 0.0, %v776
        %778 = vmatmul.bf16.gmra.mxu0 %v609
        %v779 = vpop.f32.mrf.mxu0
        %v780 = vadd.f32 0.0, %v779
        %v781 = vpop.f32.mrf.mxu0
        %v782 = vadd.f32 0.0, %v781
        %783 = vdwg.mxu0
        %vm784 = vcmask 523264
        %785 = vst.msk [vmem:[%s259] sm:$0xff] %vm784, %v625
        %786 = vst.msk [vmem:[%s259 + $0x8] sm:$0xff] %vm784, %v627
        %787 = vst.msk [vmem:[%s259 + $0x10] sm:$0xff] %vm784, %v630
        %788 = vst.msk [vmem:[%s259 + $0x18] sm:$0xff] %vm784, %v632
        %789 = vst.msk [vmem:[%s259 + $0x20] sm:$0xff] %vm784, %v635
        %790 = vst.msk [vmem:[%s259 + $0x28] sm:$0xff] %vm784, %v637
        %791 = vst.msk [vmem:[%s259 + $0x30] sm:$0xff] %vm784, %v640
        %792 = vst.msk [vmem:[%s259 + $0x38] sm:$0xff] %vm784, %v642
        %793 = vst.msk [vmem:[%s259 + $0x40] sm:$0xff] %vm784, %v645
        %794 = vst.msk [vmem:[%s259 + $0x48] sm:$0xff] %vm784, %v647
        %795 = vst.msk [vmem:[%s259 + $0x50] sm:$0xff] %vm784, %v650
        %796 = vst.msk [vmem:[%s259 + $0x58] sm:$0xff] %vm784, %v652
        %797 = vst.msk [vmem:[%s259 + $0x60] sm:$0xff] %vm784, %v655
        %798 = vst.msk [vmem:[%s259 + $0x68] sm:$0xff] %vm784, %v657
        %799 = vst.msk [vmem:[%s259 + $0x70] sm:$0xff] %vm784, %v660
        %800 = vst.msk [vmem:[%s259 + $0x78] sm:$0xff] %vm784, %v662
        %801 = vst.msk [vmem:[%s259 + $0x80] sm:$0xff] %vm784, %v665
        %802 = vst.msk [vmem:[%s259 + $0x88] sm:$0xff] %vm784, %v667
        %803 = vst.msk [vmem:[%s259 + $0x90] sm:$0xff] %vm784, %v670
        %804 = vst.msk [vmem:[%s259 + $0x98] sm:$0xff] %vm784, %v672
        %805 = vst.msk [vmem:[%s259 + $0xa0] sm:$0xff] %vm784, %v675
        %806 = vst.msk [vmem:[%s259 + $0xa8] sm:$0xff] %vm784, %v677
        %807 = vst.msk [vmem:[%s259 + $0xb0] sm:$0xff] %vm784, %v680
        %808 = vst.msk [vmem:[%s259 + $0xb8] sm:$0xff] %vm784, %v682
        %809 = vst.msk [vmem:[%s259 + $0xc0] sm:$0xff] %vm784, %v685
        %810 = vst.msk [vmem:[%s259 + $0xc8] sm:$0xff] %vm784, %v687
        %811 = vst.msk [vmem:[%s259 + $0xd0] sm:$0xff] %vm784, %v690
        %812 = vst.msk [vmem:[%s259 + $0xd8] sm:$0xff] %vm784, %v692
        %813 = vst.msk [vmem:[%s259 + $0xe0] sm:$0xff] %vm784, %v695
        %814 = vst.msk [vmem:[%s259 + $0xe8] sm:$0xff] %vm784, %v697
        %815 = vst.msk [vmem:[%s259 + $0xf0] sm:$0xff] %vm784, %v700
        %816 = vst.msk [vmem:[%s259 + $0xf8] sm:$0xff] %vm784, %v702
        %817 = vst.msk [vmem:[%s259 + $0x100] sm:$0xff] %vm784, %v705
        %818 = vst.msk [vmem:[%s259 + $0x108] sm:$0xff] %vm784, %v707
        %819 = vst.msk [vmem:[%s259 + $0x110] sm:$0xff] %vm784, %v710
        %820 = vst.msk [vmem:[%s259 + $0x118] sm:$0xff] %vm784, %v712
        %821 = vst.msk [vmem:[%s259 + $0x120] sm:$0xff] %vm784, %v715
        %822 = vst.msk [vmem:[%s259 + $0x128] sm:$0xff] %vm784, %v717
        %823 = vst.msk [vmem:[%s259 + $0x130] sm:$0xff] %vm784, %v720
        %824 = vst.msk [vmem:[%s259 + $0x138] sm:$0xff] %vm784, %v722
        %825 = vst.msk [vmem:[%s259 + $0x140] sm:$0xff] %vm784, %v725
        %826 = vst.msk [vmem:[%s259 + $0x148] sm:$0xff] %vm784, %v727
        %827 = vst.msk [vmem:[%s259 + $0x150] sm:$0xff] %vm784, %v730
        %828 = vst.msk [vmem:[%s259 + $0x158] sm:$0xff] %vm784, %v732
        %829 = vst.msk [vmem:[%s259 + $0x160] sm:$0xff] %vm784, %v735
        %830 = vst.msk [vmem:[%s259 + $0x168] sm:$0xff] %vm784, %v737
        %831 = vst.msk [vmem:[%s259 + $0x170] sm:$0xff] %vm784, %v740
        %832 = vst.msk [vmem:[%s259 + $0x178] sm:$0xff] %vm784, %v742
        %833 = vst.msk [vmem:[%s259 + $0x180] sm:$0xff] %vm784, %v745
        %834 = vst.msk [vmem:[%s259 + $0x188] sm:$0xff] %vm784, %v747
        %835 = vst.msk [vmem:[%s259 + $0x190] sm:$0xff] %vm784, %v750
        %836 = vst.msk [vmem:[%s259 + $0x198] sm:$0xff] %vm784, %v752
        %837 = vst.msk [vmem:[%s259 + $0x1a0] sm:$0xff] %vm784, %v755
        %838 = vst.msk [vmem:[%s259 + $0x1a8] sm:$0xff] %vm784, %v757
        %839 = vst.msk [vmem:[%s259 + $0x1b0] sm:$0xff] %vm784, %v760
        %840 = vst.msk [vmem:[%s259 + $0x1b8] sm:$0xff] %vm784, %v762
        %841 = vst.msk [vmem:[%s259 + $0x1c0] sm:$0xff] %vm784, %v765
        %842 = vst.msk [vmem:[%s259 + $0x1c8] sm:$0xff] %vm784, %v767
        %843 = vst.msk [vmem:[%s259 + $0x1d0] sm:$0xff] %vm784, %v770
        %844 = vst.msk [vmem:[%s259 + $0x1d8] sm:$0xff] %vm784, %v772
        %845 = vst.msk [vmem:[%s259 + $0x1e0] sm:$0xff] %vm784, %v775
        %846 = vst.msk [vmem:[%s259 + $0x1e8] sm:$0xff] %vm784, %v777
        %847 = vst.msk [vmem:[%s259 + $0x1f0] sm:$0xff] %vm784, %v780
        %848 = vst.msk [vmem:[%s259 + $0x1f8] sm:$0xff] %vm784, %v782
        %v849 = vsel %vm784, %v625, 0.0
        %v850 = vsel %vm784, %v627, 0.0
        %v851 = vadd.f32 %v849, %v850
        %v852 = vsel %vm784, %v630, 0.0
        %v853 = vadd.f32 %v851, %v852
        %v854 = vsel %vm784, %v632, 0.0
        %v855 = vadd.f32 %v853, %v854
        %v856 = vsel %vm784, %v635, 0.0
        %v857 = vadd.f32 %v855, %v856
        %v858 = vsel %vm784, %v637, 0.0
        %v859 = vadd.f32 %v857, %v858
        %v860 = vsel %vm784, %v640, 0.0
        %v861 = vadd.f32 %v859, %v860
        %v862 = vsel %vm784, %v642, 0.0
        %v863 = vadd.f32 %v861, %v862
        %v864 = vsel %vm784, %v645, 0.0
        %v865 = vadd.f32 %v863, %v864
        %v866 = vsel %vm784, %v647, 0.0
        %v867 = vadd.f32 %v865, %v866
        %v868 = vsel %vm784, %v650, 0.0
        %v869 = vadd.f32 %v867, %v868
        %v870 = vsel %vm784, %v652, 0.0
        %v871 = vadd.f32 %v869, %v870
        %v872 = vsel %vm784, %v655, 0.0
        %v873 = vadd.f32 %v871, %v872
        %v874 = vsel %vm784, %v657, 0.0
        %v875 = vadd.f32 %v873, %v874
        %v876 = vsel %vm784, %v660, 0.0
        %v877 = vadd.f32 %v875, %v876
        %v878 = vsel %vm784, %v662, 0.0
        %v879 = vadd.f32 %v877, %v878
        %v880 = vsel %vm784, %v665, 0.0
        %v881 = vadd.f32 %v879, %v880
        %v882 = vsel %vm784, %v667, 0.0
        %v883 = vadd.f32 %v881, %v882
        %v884 = vsel %vm784, %v670, 0.0
        %v885 = vadd.f32 %v883, %v884
        %v886 = vsel %vm784, %v672, 0.0
        %v887 = vadd.f32 %v885, %v886
        %v888 = vsel %vm784, %v675, 0.0
        %v889 = vadd.f32 %v887, %v888
        %v890 = vsel %vm784, %v677, 0.0
        %v891 = vadd.f32 %v889, %v890
        %v892 = vsel %vm784, %v680, 0.0
        %v893 = vadd.f32 %v891, %v892
        %v894 = vsel %vm784, %v682, 0.0
        %v895 = vadd.f32 %v893, %v894
        %v896 = vsel %vm784, %v685, 0.0
        %v897 = vadd.f32 %v895, %v896
        %v898 = vsel %vm784, %v687, 0.0
        %v899 = vadd.f32 %v897, %v898
        %v900 = vsel %vm784, %v690, 0.0
        %v901 = vadd.f32 %v899, %v900
        %v902 = vsel %vm784, %v692, 0.0
        %v903 = vadd.f32 %v901, %v902
        %v904 = vsel %vm784, %v695, 0.0
        %v905 = vadd.f32 %v903, %v904
        %v906 = vsel %vm784, %v697, 0.0
        %v907 = vadd.f32 %v905, %v906
        %v908 = vsel %vm784, %v700, 0.0
        %v909 = vadd.f32 %v907, %v908
        %v910 = vsel %vm784, %v702, 0.0
        %v911 = vadd.f32 %v909, %v910
        %v912 = vsel %vm784, %v705, 0.0
        %v913 = vadd.f32 %v911, %v912
        %v914 = vsel %vm784, %v707, 0.0
        %v915 = vadd.f32 %v913, %v914
        %v916 = vsel %vm784, %v710, 0.0
        %v917 = vadd.f32 %v915, %v916
        %v918 = vsel %vm784, %v712, 0.0
        %v919 = vadd.f32 %v917, %v918
        %v920 = vsel %vm784, %v715, 0.0
        %v921 = vadd.f32 %v919, %v920
        %v922 = vsel %vm784, %v717, 0.0
        %v923 = vadd.f32 %v921, %v922
        %v924 = vsel %vm784, %v720, 0.0
        %v925 = vadd.f32 %v923, %v924
        %v926 = vsel %vm784, %v722, 0.0
        %v927 = vadd.f32 %v925, %v926
        %v928 = vsel %vm784, %v725, 0.0
        %v929 = vadd.f32 %v927, %v928
        %v930 = vsel %vm784, %v727, 0.0
        %v931 = vadd.f32 %v929, %v930
        %v932 = vsel %vm784, %v730, 0.0
        %v933 = vadd.f32 %v931, %v932
        %v934 = vsel %vm784, %v732, 0.0
        %v935 = vadd.f32 %v933, %v934
        %v936 = vsel %vm784, %v735, 0.0
        %v937 = vadd.f32 %v935, %v936
        %v938 = vsel %vm784, %v737, 0.0
        %v939 = vadd.f32 %v937, %v938
        %v940 = vsel %vm784, %v740, 0.0
        %v941 = vadd.f32 %v939, %v940
        %v942 = vsel %vm784, %v742, 0.0
        %v943 = vadd.f32 %v941, %v942
        %v944 = vsel %vm784, %v745, 0.0
        %v945 = vadd.f32 %v943, %v944
        %v946 = vsel %vm784, %v747, 0.0
        %v947 = vadd.f32 %v945, %v946
        %v948 = vsel %vm784, %v750, 0.0
        %v949 = vadd.f32 %v947, %v948
        %v950 = vsel %vm784, %v752, 0.0
        %v951 = vadd.f32 %v949, %v950
        %v952 = vsel %vm784, %v755, 0.0
        %v953 = vadd.f32 %v951, %v952
        %v954 = vsel %vm784, %v757, 0.0
        %v955 = vadd.f32 %v953, %v954
        %v956 = vsel %vm784, %v760, 0.0
        %v957 = vadd.f32 %v955, %v956
        %v958 = vsel %vm784, %v762, 0.0
        %v959 = vadd.f32 %v957, %v958
        %v960 = vsel %vm784, %v765, 0.0
        %v961 = vadd.f32 %v959, %v960
        %v962 = vsel %vm784, %v767, 0.0
        %v963 = vadd.f32 %v961, %v962
        %v964 = vsel %vm784, %v770, 0.0
        %v965 = vadd.f32 %v963, %v964
        %v966 = vsel %vm784, %v772, 0.0
        %v967 = vadd.f32 %v965, %v966
        %v968 = vsel %vm784, %v775, 0.0
        %v969 = vadd.f32 %v967, %v968
        %v970 = vsel %vm784, %v777, 0.0
        %v971 = vadd.f32 %v969, %v970
        %v972 = vsel %vm784, %v780, 0.0
        %v973 = vadd.f32 %v971, %v972
        %v974 = vsel %vm784, %v782, 0.0
        %v975 = vadd.f32 %v973, %v974
        %v976 = vrot.slane %v975, 4
        %v977 = vadd.f32 %v975, %v976
        %v978 = vrot.slane %v977, 2
        %v979 = vadd.f32 %v977, %v978
        %v980 = vrot.slane %v979, 1
        %v981 = vadd.f32 %v979, %v980
        %vm982 = vcmask 516096
        %983 = vst.msk [vmem:[%s235] sm:$0x1] %vm982, %v981
        %v984 = vmul.f32 %v625, %v625
        %v985 = vmul.f32 %v627, %v627
        %v986 = vmul.f32 %v630, %v630
        %v987 = vmul.f32 %v632, %v632
        %v988 = vmul.f32 %v635, %v635
        %v989 = vmul.f32 %v637, %v637
        %v990 = vmul.f32 %v640, %v640
        %v991 = vmul.f32 %v642, %v642
        %v992 = vmul.f32 %v645, %v645
        %v993 = vmul.f32 %v647, %v647
        %v994 = vmul.f32 %v650, %v650
        %v995 = vmul.f32 %v652, %v652
        %v996 = vmul.f32 %v655, %v655
        %v997 = vmul.f32 %v657, %v657
        %v998 = vmul.f32 %v660, %v660
        %v999 = vmul.f32 %v662, %v662
        %v1000 = vmul.f32 %v665, %v665
        %v1001 = vmul.f32 %v667, %v667
        %v1002 = vmul.f32 %v670, %v670
        %v1003 = vmul.f32 %v672, %v672
        %v1004 = vmul.f32 %v675, %v675
        %v1005 = vmul.f32 %v677, %v677
        %v1006 = vmul.f32 %v680, %v680
        %v1007 = vmul.f32 %v682, %v682
        %v1008 = vmul.f32 %v685, %v685
        %v1009 = vmul.f32 %v687, %v687
        %v1010 = vmul.f32 %v690, %v690
        %v1011 = vmul.f32 %v692, %v692
        %v1012 = vmul.f32 %v695, %v695
        %v1013 = vmul.f32 %v697, %v697
        %v1014 = vmul.f32 %v700, %v700
        %v1015 = vmul.f32 %v702, %v702
        %v1016 = vmul.f32 %v705, %v705
        %v1017 = vmul.f32 %v707, %v707
        %v1018 = vmul.f32 %v710, %v710
        %v1019 = vmul.f32 %v712, %v712
        %v1020 = vmul.f32 %v715, %v715
        %v1021 = vmul.f32 %v717, %v717
        %v1022 = vmul.f32 %v720, %v720
        %v1023 = vmul.f32 %v722, %v722
        %v1024 = vmul.f32 %v725, %v725
        %v1025 = vmul.f32 %v727, %v727
        %v1026 = vmul.f32 %v730, %v730
        %v1027 = vmul.f32 %v732, %v732
        %v1028 = vmul.f32 %v735, %v735
        %v1029 = vmul.f32 %v737, %v737
        %v1030 = vmul.f32 %v740, %v740
        %v1031 = vmul.f32 %v742, %v742
        %v1032 = vmul.f32 %v745, %v745
        %v1033 = vmul.f32 %v747, %v747
        %v1034 = vmul.f32 %v750, %v750
        %v1035 = vmul.f32 %v752, %v752
        %v1036 = vmul.f32 %v755, %v755
        %v1037 = vmul.f32 %v757, %v757
        %v1038 = vmul.f32 %v760, %v760
        %v1039 = vmul.f32 %v762, %v762
        %v1040 = vmul.f32 %v765, %v765
        %v1041 = vmul.f32 %v767, %v767
        %v1042 = vmul.f32 %v770, %v770
        %v1043 = vmul.f32 %v772, %v772
        %v1044 = vmul.f32 %v775, %v775
        %v1045 = vmul.f32 %v777, %v777
        %v1046 = vmul.f32 %v780, %v780
        %v1047 = vmul.f32 %v782, %v782
        %v1048 = vsel %vm784, %v984, 0.0
        %v1049 = vsel %vm784, %v985, 0.0
        %v1050 = vadd.f32 %v1048, %v1049
        %v1051 = vsel %vm784, %v986, 0.0
        %v1052 = vadd.f32 %v1050, %v1051
        %v1053 = vsel %vm784, %v987, 0.0
        %v1054 = vadd.f32 %v1052, %v1053
        %v1055 = vsel %vm784, %v988, 0.0
        %v1056 = vadd.f32 %v1054, %v1055
        %v1057 = vsel %vm784, %v989, 0.0
        %v1058 = vadd.f32 %v1056, %v1057
        %v1059 = vsel %vm784, %v990, 0.0
        %v1060 = vadd.f32 %v1058, %v1059
        %v1061 = vsel %vm784, %v991, 0.0
        %v1062 = vadd.f32 %v1060, %v1061
        %v1063 = vsel %vm784, %v992, 0.0
        %v1064 = vadd.f32 %v1062, %v1063
        %v1065 = vsel %vm784, %v993, 0.0
        %v1066 = vadd.f32 %v1064, %v1065
        %v1067 = vsel %vm784, %v994, 0.0
        %v1068 = vadd.f32 %v1066, %v1067
        %v1069 = vsel %vm784, %v995, 0.0
        %v1070 = vadd.f32 %v1068, %v1069
        %v1071 = vsel %vm784, %v996, 0.0
        %v1072 = vadd.f32 %v1070, %v1071
        %v1073 = vsel %vm784, %v997, 0.0
        %v1074 = vadd.f32 %v1072, %v1073
        %v1075 = vsel %vm784, %v998, 0.0
        %v1076 = vadd.f32 %v1074, %v1075
        %v1077 = vsel %vm784, %v999, 0.0
        %v1078 = vadd.f32 %v1076, %v1077
        %v1079 = vsel %vm784, %v1000, 0.0
        %v1080 = vadd.f32 %v1078, %v1079
        %v1081 = vsel %vm784, %v1001, 0.0
        %v1082 = vadd.f32 %v1080, %v1081
        %v1083 = vsel %vm784, %v1002, 0.0
        %v1084 = vadd.f32 %v1082, %v1083
        %v1085 = vsel %vm784, %v1003, 0.0
        %v1086 = vadd.f32 %v1084, %v1085
        %v1087 = vsel %vm784, %v1004, 0.0
        %v1088 = vadd.f32 %v1086, %v1087
        %v1089 = vsel %vm784, %v1005, 0.0
        %v1090 = vadd.f32 %v1088, %v1089
        %v1091 = vsel %vm784, %v1006, 0.0
        %v1092 = vadd.f32 %v1090, %v1091
        %v1093 = vsel %vm784, %v1007, 0.0
        %v1094 = vadd.f32 %v1092, %v1093
        %v1095 = vsel %vm784, %v1008, 0.0
        %v1096 = vadd.f32 %v1094, %v1095
        %v1097 = vsel %vm784, %v1009, 0.0
        %v1098 = vadd.f32 %v1096, %v1097
        %v1099 = vsel %vm784, %v1010, 0.0
        %v1100 = vadd.f32 %v1098, %v1099
        %v1101 = vsel %vm784, %v1011, 0.0
        %v1102 = vadd.f32 %v1100, %v1101
        %v1103 = vsel %vm784, %v1012, 0.0
        %v1104 = vadd.f32 %v1102, %v1103
        %v1105 = vsel %vm784, %v1013, 0.0
        %v1106 = vadd.f32 %v1104, %v1105
        %v1107 = vsel %vm784, %v1014, 0.0
        %v1108 = vadd.f32 %v1106, %v1107
        %v1109 = vsel %vm784, %v1015, 0.0
        %v1110 = vadd.f32 %v1108, %v1109
        %v1111 = vsel %vm784, %v1016, 0.0
        %v1112 = vadd.f32 %v1110, %v1111
        %v1113 = vsel %vm784, %v1017, 0.0
        %v1114 = vadd.f32 %v1112, %v1113
        %v1115 = vsel %vm784, %v1018, 0.0
        %v1116 = vadd.f32 %v1114, %v1115
        %v1117 = vsel %vm784, %v1019, 0.0
        %v1118 = vadd.f32 %v1116, %v1117
        %v1119 = vsel %vm784, %v1020, 0.0
        %v1120 = vadd.f32 %v1118, %v1119
        %v1121 = vsel %vm784, %v1021, 0.0
        %v1122 = vadd.f32 %v1120, %v1121
        %v1123 = vsel %vm784, %v1022, 0.0
        %v1124 = vadd.f32 %v1122, %v1123
        %v1125 = vsel %vm784, %v1023, 0.0
        %v1126 = vadd.f32 %v1124, %v1125
        %v1127 = vsel %vm784, %v1024, 0.0
        %v1128 = vadd.f32 %v1126, %v1127
        %v1129 = vsel %vm784, %v1025, 0.0
        %v1130 = vadd.f32 %v1128, %v1129
        %v1131 = vsel %vm784, %v1026, 0.0
        %v1132 = vadd.f32 %v1130, %v1131
        %v1133 = vsel %vm784, %v1027, 0.0
        %v1134 = vadd.f32 %v1132, %v1133
        %v1135 = vsel %vm784, %v1028, 0.0
        %v1136 = vadd.f32 %v1134, %v1135
        %v1137 = vsel %vm784, %v1029, 0.0
        %v1138 = vadd.f32 %v1136, %v1137
        %v1139 = vsel %vm784, %v1030, 0.0
        %v1140 = vadd.f32 %v1138, %v1139
        %v1141 = vsel %vm784, %v1031, 0.0
        %v1142 = vadd.f32 %v1140, %v1141
        %v1143 = vsel %vm784, %v1032, 0.0
        %v1144 = vadd.f32 %v1142, %v1143
        %v1145 = vsel %vm784, %v1033, 0.0
        %v1146 = vadd.f32 %v1144, %v1145
        %v1147 = vsel %vm784, %v1034, 0.0
        %v1148 = vadd.f32 %v1146, %v1147
        %v1149 = vsel %vm784, %v1035, 0.0
        %v1150 = vadd.f32 %v1148, %v1149
        %v1151 = vsel %vm784, %v1036, 0.0
        %v1152 = vadd.f32 %v1150, %v1151
        %v1153 = vsel %vm784, %v1037, 0.0
        %v1154 = vadd.f32 %v1152, %v1153
        %v1155 = vsel %vm784, %v1038, 0.0
        %v1156 = vadd.f32 %v1154, %v1155
        %v1157 = vsel %vm784, %v1039, 0.0
        %v1158 = vadd.f32 %v1156, %v1157
        %v1159 = vsel %vm784, %v1040, 0.0
        %v1160 = vadd.f32 %v1158, %v1159
        %v1161 = vsel %vm784, %v1041, 0.0
        %v1162 = vadd.f32 %v1160, %v1161
        %v1163 = vsel %vm784, %v1042, 0.0
        %v1164 = vadd.f32 %v1162, %v1163
        %v1165 = vsel %vm784, %v1043, 0.0
        %v1166 = vadd.f32 %v1164, %v1165
        %v1167 = vsel %vm784, %v1044, 0.0
        %v1168 = vadd.f32 %v1166, %v1167
        %v1169 = vsel %vm784, %v1045, 0.0
        %v1170 = vadd.f32 %v1168, %v1169
        %v1171 = vsel %vm784, %v1046, 0.0
        %v1172 = vadd.f32 %v1170, %v1171
        %v1173 = vsel %vm784, %v1047, 0.0
        %v1174 = vadd.f32 %v1172, %v1173
        %v1175 = vrot.slane %v1174, 4
        %v1176 = vadd.f32 %v1174, %v1175
        %v1177 = vrot.slane %v1176, 2
        %v1178 = vadd.f32 %v1176, %v1177
        %v1179 = vrot.slane %v1178, 1
        %v1180 = vadd.f32 %v1178, %v1179
        %1181 = vst.msk [vmem:[%s241] sm:$0x1] %vm982, %v1180
        %s1182 = smul.u32 64, %s26
        %p1183 = scmp.lt.s32.totalorder %s1182, 127
        %s1184 = scalar_select %p1183, %s1182, 127
        %p1185 = scmp.lt.s32.totalorder %s27, 0
        %s1186 = scalar_select %p1185, %s27, 0
        %s1187 = sadd.s32 %s1186, %s1184
        %s1188 = smul.addr %s1187, 8
        %s1189 = scalar_lea.vmem %s2, %s1188
        %s1190 = sand.u32 %s124, 1
        %s1191 = scalar_lea.sflag [#allocation3], %s1190
        %s1192 = sand.u32 %s124, 1
        %s1193 = scalar_lea.vmem [#allocation2], %s1192
        %s1194 = sand.u32 %s152, 1
        %s1195 = scalar_lea.sflag [#allocation5], %s1194
        %s1196 = sand.u32 %s152, 1
        %s1197 = scalar_lea.vmem [#allocation4], %s1196
        // Predicated region
        $region29: #{tpu_custom_call.1} parent=27 // pred_check
          %p1198 = pneg %p106
        $region30: #{tpu_custom_call.1} parent=27 // pred_check_branch
          %1200 = sbr.rel (%p1198) target = $region32
        $region31: #{tpu_custom_call.1} parent=27 // pred_region
          %s1201 = smul.u32 64, %s26
        $region32: #{tpu_custom_call.1} parent=27 // pred_fallthru
          _
        // Predicated region
        $region33: #{tpu_custom_call.1} parent=27 // pred_check
          %p1202 = pneg %p134
        $region34: #{tpu_custom_call.1} parent=27 // pred_check_branch
          %1204 = sbr.rel (%p1202) target = $region36
        $region35: #{tpu_custom_call.1} parent=27 // pred_region
          %1206 = vsyncadd %s1191, 0
          %s1207 = sadd.s32 %s27, %s26
          %s1208 = scalar_lea.hbm %s3, %s1207
          %s1210 = sshll.u32 %s1193, 4
          %s1211 = int_to_ptr.vmem [resolvable:$true] %s1210
          %s1212 = sshll.u32 %s1208, 4
          %s1213 = int_to_ptr.hbm [resolvable:$true] %s1212
          %1215 = dma.vmem_to_hbm [thread:$0]  %s1211, 16, %s1213, %s1191
        $region36: #{tpu_custom_call.1} parent=27 // pred_fallthru
          _
        // Predicated region
        $region37: #{tpu_custom_call.1} parent=27 // pred_check
          %p1216 = pneg %p162
        $region38: #{tpu_custom_call.1} parent=27 // pred_check_branch
          %1218 = sbr.rel (%p1216) target = $region40
        $region39: #{tpu_custom_call.1} parent=27 // pred_region
          %1220 = vsyncadd %s1195, 0
          %s1221 = sadd.s32 %s27, %s26
          %s1222 = scalar_lea.hbm %s4, %s1221
          %s1224 = sshll.u32 %s1197, 4
          %s1225 = int_to_ptr.vmem [resolvable:$true] %s1224
          %s1226 = sshll.u32 %s1222, 4
          %s1227 = int_to_ptr.hbm [resolvable:$true] %s1226
          %1229 = dma.vmem_to_hbm [thread:$0]  %s1225, 16, %s1227, %s1195
        $region40: #{tpu_custom_call.1} parent=27 // pred_fallthru
          _
      $region28: #{tpu_custom_call.1} parent=5 // pred_fallthru
        _
      %p1230 = scmp.le.s32.totalorder 2, %s17
      // Predicated region
      $region41: #{tpu_custom_call.1} parent=5 // pred_check
        %p1231 = pneg %p1230
      $region42: #{tpu_custom_call.1} parent=5 // pred_check_branch
        %1233 = sbr.rel (%p1231) target = $region44
      $region43: #{tpu_custom_call.1} parent=5 // pred_region
        %s1234 = ssub.s32 %s17, 2
        // Predicated region
        $region45: #{tpu_custom_call.1} parent=43 // pred_check
          %p1235 = pneg %p112
        $region46: #{tpu_custom_call.1} parent=43 // pred_check_branch
          %1237 = sbr.rel (%p1235) target = $region48
        $region47: #{tpu_custom_call.1} parent=43 // pred_region
          %s1238 = smul.u32 64, %s28
          %p1239 = scmp.lt.s32.totalorder %s1238, 127
          %s1240 = scalar_select %p1239, %s1238, 127
          %p1241 = scmp.lt.s32.totalorder %s29, 0
          %s1242 = scalar_select %p1241, %s29, 0
          %s1243 = sadd.s32 %s1242, %s1240
          %s1244 = smul.addr %s1243, 8
          %s1245 = scalar_lea.vmem %s2, %s1244
        $region48: #{tpu_custom_call.1} parent=43 // pred_fallthru
          _
        // Predicated region
        $region49: #{tpu_custom_call.1} parent=43 // pred_check
          %p1246 = pneg %p140
        $region50: #{tpu_custom_call.1} parent=43 // pred_check_branch
          %1248 = sbr.rel (%p1246) target = $region52
        $region51: #{tpu_custom_call.1} parent=43 // pred_region
          %s1249 = sand.u32 %s125, 1
          %s1250 = scalar_lea.sflag [#allocation3], %s1249
          %s1251 = sand.u32 %s125, 1
          %s1252 = scalar_lea.vmem [#allocation2], %s1251
          %1254 = dma.done %s1250, 16
        $region52: #{tpu_custom_call.1} parent=43 // pred_fallthru
          _
        // Predicated region
        $region53: #{tpu_custom_call.1} parent=43 // pred_check
          %p1255 = pneg %p168
        $region54: #{tpu_custom_call.1} parent=43 // pred_check_branch
          %1257 = sbr.rel (%p1255) target = $region56
        $region55: #{tpu_custom_call.1} parent=43 // pred_region
          %s1258 = sand.u32 %s153, 1
          %s1259 = scalar_lea.sflag [#allocation5], %s1258
          %s1260 = sand.u32 %s153, 1
          %s1261 = scalar_lea.vmem [#allocation4], %s1260
          %1263 = dma.done %s1259, 16
        $region56: #{tpu_custom_call.1} parent=43 // pred_fallthru
          _
      $region44: #{tpu_custom_call.1} parent=5 // pred_fallthru
        _
    $region6: #{tpu_custom_call.1} parent=1 // loop_footer
      %s21 = sadd.s32 1, %s17
    $region7: #{tpu_custom_call.1} parent=1 // loop_footer_branch
      %16 = sbr.rel target = $region3
    $region8: #{tpu_custom_call.1} parent=1 // loop_exit
      _
    %1264 = vsyncpa [#allocation3], 1
    %s1265 = scalar_lea.sflag [#allocation3], 1
    %1266 = vsyncpa %s1265, 1
    %1267 = vsyncpa [#allocation5], 1
    %s1268 = scalar_lea.sflag [#allocation5], 1
    %1269 = vsyncpa %s1268, 1

</llo_original>
